<compile_context>
chip_gen: v7x
topology: tpu7x:2x2x1
jax: 0.10.0
libtpu: 0.0.40
codegen_flags: <defaults>
</compile_context>

<pallas_src>
import functools

import jax
import jax.numpy as jnp
from jax.experimental import pallas as pl
from jax.experimental.pallas import tpu as pltpu

_MIB = 1024 * 1024
_F32_TEMPS = 8  # conservative count of live full-tile f32 temporaries in-kernel


def _round_up(x, m):
    return ((x + m - 1) // m) * m


def _round_down(x, m):
    return (x // m) * m


def _scoped_vmem_bytes():
    """Generation-aware scoped-VMEM budget, passed explicitly to the compiler."""
    cap = 64 * _MIB  # conservative fallback (v7x per-TensorCore VMEM)
    try:
        info = pltpu.get_tpu_info()
        cap = int(getattr(info, "vmem_capacity_bytes", cap)) or cap
    except Exception:
        pass  # not on TPU / API unavailable -> keep the safe fallback
    # Half of physical VMEM: 64 MiB on v5e/v6e (128 MiB parts), 32 MiB on v7x.
    return min(cap // 2, 64 * _MIB)


def _pick_tile(n, granule, max_rows):
    """Sample-dim tile: fill the VMEM budget but keep >= 2 grid steps (v7x TCs)."""
    if n <= granule:
        return n
    t = max(granule, _round_down(max_rows, granule))
    half = _round_up(-(-n // 2), granule)
    return min(t, half)


def _focal_loss_kernel(logits_ref, tgt_ref, out_ref, *, gamma, tile, n_rows,
                       lane_major, exp_dtype, has_tail):
    """One tile of samples.

    logits block: (tile, C) in the wire dtype.
    targets block: (1, tile) int32 if lane_major else (tile, 1) int32.
    Writes the tile's partial sum of -(1 - p_t)^gamma * log p_t broadcast over a
    lane-dense (1, 1, 128) output block.
    """
    xw = logits_ref[...]
    tgt = tgt_ref[...]

    if lane_major:
        # In-kernel lane-dense relayout: classes on sublanes, samples on lanes.
        # The f32 XLU transpose hides under the block DMA and avoids ~12.8x
        # lane-padded EUP/VPU work for small C (and the old wrapper-side HBM
        # transpose round-trip).
        x = xw.astype(jnp.float32).T          # (C, tile)
        class_axis, sample_axis = 0, 1
    else:
        x = xw                                # (tile, C): compute in wire dtype
        class_axis, sample_axis = 1, 0

    # Numerically stable log-softmax pieces along the class axis.
    m = jnp.max(x, axis=class_axis, keepdims=True)
    z = x - m
    exp_z = jnp.exp(z.astype(exp_dtype))      # bf16 EUP on v6e/v7x for bf16 wire
    sum_exp = jnp.sum(exp_z.astype(jnp.float32), axis=class_axis, keepdims=True)
    lse = jnp.log(sum_exp)                    # f32, one per sample

    # Gather z at the target class via a one-hot select (no full-tile log_prob,
    # no full-tile pow). Exactly one element per sample survives, so the sum is
    # exact even in bf16.
    cls = jax.lax.broadcasted_iota(jnp.int32, z.shape, class_axis)
    z_t = jnp.sum(jnp.where(cls == tgt, z, 0), axis=class_axis,
                  keepdims=True).astype(jnp.float32)

    log_p_t = z_t - lse                       # log p_target, per sample, f32
    p_t = jnp.exp(log_p_t)
    one_m = jnp.maximum(1.0 - p_t, 0.0)       # clamp guards pow/NaN when p_t ~ 1

    g = float(gamma)
    if g == 2.0:
        mod = one_m * one_m                   # VPU squares, no EUP pow
    elif g == int(g) and 0.0 <= g <= 8.0:
        mod = jnp.ones_like(one_m)
        for _ in range(int(g)):
            mod = mod * one_m
    else:
        mod = one_m ** g
    focal_t = mod * log_p_t                   # per-sample, f32

    if has_tail:
        # Only emitted when the last tile is actually partial (static check);
        # the select discards any NaN/Inf produced by padded garbage rows.
        samp = jax.lax.broadcasted_iota(jnp.int32, focal_t.shape, sample_axis)
        valid = (pl.program_id(0) * tile + samp) < n_rows
        focal_t = jnp.where(valid, focal_t, 0.0)

    out_ref[...] = jnp.full(out_ref.shape, -jnp.sum(focal_t), dtype=jnp.float32)


def focal_loss(logits, targets, gamma=2.0, *, tile=None, lane_major=None,
               exp_dtype=None):
    """logits: (N, C) float (f32/bf16); targets: (N,) int. Returns scalar f32 loss.

    TODO(synk): per-class `weight` and `ignore_index` of F.nll_loss are not wired
    in; the module's defaults (weight=None) are assumed.
    """
    n, c = logits.shape
    wire_dtype = logits.dtype
    itemsize = jnp.dtype(wire_dtype).itemsize

    if lane_major is None:
        lane_major = c < 128                  # small C: relayout lane-dense in-kernel
    if exp_dtype is None:
        # bf16 wire -> bf16 EUP exp (native on v6e/v7x); per-sample math stays f32.
        exp_dtype = jnp.bfloat16 if wire_dtype == jnp.bfloat16 else jnp.float32

    sublane = max(8, 32 // itemsize)          # 8 f32 / 16 bf16 / 32 int8
    granule = 128 if lane_major else sublane  # sample-dim rounding granule

    scoped_vmem = _scoped_vmem_bytes()
    c_padded = _round_up(c, 128)              # lane padding of the VMEM block
    per_row_bytes = c_padded * (2 * itemsize + 4 * _F32_TEMPS)
    max_rows = max(granule, int(scoped_vmem * 0.7) // per_row_bytes)

    if tile is None:
        tile = _pick_tile(n, granule, max_rows)
    tile = min(tile, n)
    num_tiles = pl.cdiv(n, tile)
    has_tail = (n % tile) != 0

    targets = targets.astype(jnp.int32)
    logits_spec = pl.BlockSpec((tile, c), lambda i: (i, 0))
    if lane_major:
        targets_k = targets.reshape(1, n)     # free relayout: samples on the lane axis
        tgt_spec = pl.BlockSpec((1, tile), lambda i: (0, i))
    else:
        targets_k = targets.reshape(n, 1)
        tgt_spec = pl.BlockSpec((tile, 1), lambda i: (i, 0))

    kernel = functools.partial(
        _focal_loss_kernel, gamma=gamma, tile=tile, n_rows=n,
        lane_major=lane_major, exp_dtype=exp_dtype, has_tail=has_tail)

    cost = pl.CostEstimate(
        flops=8 * n * c,
        transcendentals=n * c + 2 * n,        # exp/element + exp,log per sample
        bytes_accessed=n * c * itemsize + n * 4 + num_tiles * 128 * 4)

    partials = pl.pallas_call(
        kernel,
        out_shape=jax.ShapeDtypeStruct((num_tiles, 1, 128), jnp.float32),
        grid=(num_tiles,),
        in_specs=[logits_spec, tgt_spec],
        out_specs=pl.BlockSpec((1, 1, 128), lambda i: (i, 0, 0)),
        compiler_params=pltpu.CompilerParams(
            dimension_semantics=("parallel",),  # shards tiles across TCs on v7x
            vmem_limit_bytes=scoped_vmem),
        cost_estimate=cost,
    )(logits, targets_k)

    # Per-tile partial sums -> mean over the true N (tiny XLA reduce).
    return jnp.sum(partials[:, 0, 0]) / n


def _reference_focal_loss(logits, targets, gamma=2.0):
    logits = logits.astype(jnp.float32)
    log_prob = jax.nn.log_softmax(logits, axis=-1)
    prob = jnp.exp(log_prob)
    focal = ((1.0 - prob) ** gamma) * log_prob
    picked = jnp.take_along_axis(
        focal, targets[:, None].astype(jnp.int32), axis=-1)[:, 0]
    return -jnp.mean(picked)


if __name__ == "__main__":
    key = jax.random.PRNGKey(0)

    # Case 1: small class count (C < 128) -> in-kernel lane-dense relayout,
    # two even tiles (2-TensorCore split), no tail.
    k1, k2, key = jax.random.split(key, 3)
    n1, c1 = 256, 10
    logits1 = jax.random.normal(k1, (n1, c1), dtype=jnp.float32)
    targets1 = jax.random.randint(k2, (n1,), 0, c1, dtype=jnp.int32)
    out1 = jax.block_until_ready(focal_loss(logits1, targets1, gamma=2.0))
    ref1 = _reference_focal_loss(logits1, targets1, gamma=2.0)
    assert jnp.allclose(out1, ref1, rtol=1e-5, atol=1e-5), (out1, ref1)

    # Case 2: C >= 128 row-major path, auto tile, partial last tile (row masking).
    k1, k2, key = jax.random.split(key, 3)
    n2, c2 = 200, 256
    logits2 = jax.random.normal(k1, (n2, c2), dtype=jnp.float32)
    targets2 = jax.random.randint(k2, (n2,), 0, c2, dtype=jnp.int32)
    out2 = jax.block_until_ready(focal_loss(logits2, targets2, gamma=2.0))
    ref2 = _reference_focal_loss(logits2, targets2, gamma=2.0)
    assert jnp.allclose(out2, ref2, rtol=1e-5, atol=1e-5), (out2, ref2)

    # Case 3: bf16 on the wire, lane-dense path, partial last lane tile,
    # bf16 EUP exp (looser tolerance vs the f32 reference).
    k1, k2, key = jax.random.split(key, 3)
    n3, c3 = 300, 16
    logits3 = jax.random.normal(k1, (n3, c3), dtype=jnp.float32).astype(jnp.bfloat16)
    targets3 = jax.random.randint(k2, (n3,), 0, c3, dtype=jnp.int32)
    out3 = jax.block_until_ready(focal_loss(logits3, targets3, gamma=2.0))
    ref3 = _reference_focal_loss(logits3.astype(jnp.float32), targets3, gamma=2.0)
    assert jnp.allclose(out3, ref3, rtol=1e-2, atol=1e-2), (out3, ref3)

    print("KERNEL_OK")
</pallas_src>

<mosaic_0001>
module attributes {stable_mosaic.version = 11 : i64} {
  func.func @_focal_loss_kernel(%arg0: i32, %arg1: memref<128x10xf32, #tpu.memory_space<vmem>>, %arg2: memref<1x128xi32, #tpu.memory_space<vmem>>, %arg3: memref<1x1x128xf32, #tpu.memory_space<vmem>>) attributes {dimension_semantics = [#tpu.dimension_semantics<parallel>], iteration_bounds = array<i64: 2>, scalar_prefetch = 0 : i64, scratch_operands = 0 : i64, tpu.core_type = #tpu.core_type<tc>, window_params = [{transform_indices = @transform_0, window_bounds = array<i64: 128, 10>}, {transform_indices = @transform_1, window_bounds = array<i64: 1, 128>}, {transform_indices = @transform_2, window_bounds = array<i64: 1, 1, 128>}]} {
    %c0 = arith.constant 0 : index
    %c0_0 = arith.constant 0 : index
    %0 = vector.load %arg1[%c0, %c0_0] : memref<128x10xf32, #tpu.memory_space<vmem>>, vector<128x10xf32>
    %c0_1 = arith.constant 0 : index
    %c0_2 = arith.constant 0 : index
    %1 = vector.load %arg2[%c0_1, %c0_2] : memref<1x128xi32, #tpu.memory_space<vmem>>, vector<1x128xi32>
    %2 = tpu.transpose %0, [1, 0] : vector<128x10xf32> -> vector<10x128xf32>
    %cst = arith.constant dense<0xFF800000> : vector<128xf32>
    %3 = vector.multi_reduction <maximumf>, %2, %cst [0] : vector<10x128xf32> to vector<128xf32>
    %4 = vector.shape_cast %3 : vector<128xf32> to vector<1x128xf32>
    %5 = vector.broadcast %4 : vector<1x128xf32> to vector<10x128xf32>
    %6 = arith.subf %2, %5 : vector<10x128xf32>
    %7 = math.exp %6 : vector<10x128xf32>
    %cst_3 = arith.constant dense<0.000000e+00> : vector<128xf32>
    %8 = vector.multi_reduction <add>, %7, %cst_3 [0] : vector<10x128xf32> to vector<128xf32>
    %9 = vector.shape_cast %8 : vector<128xf32> to vector<1x128xf32>
    %10 = math.log %9 : vector<1x128xf32>
    %11 = tpu.iota {dimensions = array<i32: 0>} : vector<10x128xi32>
    %12 = vector.broadcast %1 : vector<1x128xi32> to vector<10x128xi32>
    %13 = arith.cmpi eq, %11, %12 : vector<10x128xi32>
    %c0_i32 = arith.constant 0 : i32
    %14 = arith.sitofp %c0_i32 : i32 to f32
    %15 = vector.broadcast %14 : f32 to vector<10x128xf32>
    %16 = arith.select %13, %6, %15 : vector<10x128xi1>, vector<10x128xf32>
    %cst_4 = arith.constant dense<0.000000e+00> : vector<128xf32>
    %17 = vector.multi_reduction <add>, %16, %cst_4 [0] : vector<10x128xf32> to vector<128xf32>
    %18 = vector.shape_cast %17 : vector<128xf32> to vector<1x128xf32>
    %19 = arith.subf %18, %10 : vector<1x128xf32>
    %20 = math.exp %19 : vector<1x128xf32>
    %cst_5 = arith.constant 1.000000e+00 : f32
    %21 = vector.broadcast %cst_5 : f32 to vector<1x128xf32>
    %22 = arith.subf %21, %20 : vector<1x128xf32>
    %cst_6 = arith.constant 0.000000e+00 : f32
    %23 = vector.broadcast %cst_6 : f32 to vector<1x128xf32>
    %24 = arith.maximumf %22, %23 : vector<1x128xf32>
    %25 = arith.mulf %24, %24 : vector<1x128xf32>
    %26 = arith.mulf %25, %19 : vector<1x128xf32>
    %27 = vector.shape_cast %26 : vector<1x128xf32> to vector<1x1x128xf32>
    %cst_7 = arith.constant dense<0.000000e+00> : vector<1xf32>
    %28 = vector.multi_reduction <add>, %27, %cst_7 [1, 2] : vector<1x1x128xf32> to vector<1xf32>
    %29 = vector.shape_cast %28 : vector<1xf32> to vector<1x1x1xf32>
    %30 = vector.extract %29[0, 0, 0] : f32 from vector<1x1x1xf32>
    %cst_8 = arith.constant 0.000000e+00 : f32
    %31 = arith.subf %cst_8, %30 : f32
    %32 = vector.broadcast %31 : f32 to vector<1x1x128xf32>
    %c0_9 = arith.constant 0 : index
    %c0_10 = arith.constant 0 : index
    %c0_11 = arith.constant 0 : index
    %33 = vector.load %arg3[%c0_9, %c0_10, %c0_11] : memref<1x1x128xf32, #tpu.memory_space<vmem>>, vector<1x1x128xf32>
    tpu.vector_store %arg3[%c0_9, %c0_10, %c0_11], %32 {strides = array<i32>} : memref<1x1x128xf32, #tpu.memory_space<vmem>>, vector<1x1x128xf32>,
    return
  }
  func.func @transform_0(%arg0: i32) -> (i32, i32) {
    %c0_i32 = arith.constant 0 : i32
    %c0_i32_0 = arith.constant 0 : i32
    return %arg0, %c0_i32 : i32, i32
  }
  func.func @transform_1(%arg0: i32) -> (i32, i32) {
    %c0_i32 = arith.constant 0 : i32
    %c0_i32_0 = arith.constant 0 : i32
    return %c0_i32, %arg0 : i32, i32
  }
  func.func @transform_2(%arg0: i32) -> (i32, i32, i32) {
    %c0_i32 = arith.constant 0 : i32
    %c0_i32_0 = arith.constant 0 : i32
    %c0_i32_1 = arith.constant 0 : i32
    return %arg0, %c0_i32, %c0_i32_0 : i32, i32, i32
  }
}

</mosaic_0001>

<llo_original>
// kernel: tpu_custom_call.1
$region0: #{tpu_custom_call.1}
  #allocation0 [shape = 'u32[]', space=smem, size = 0x4, offset = 0x4, fixed_abs, tag = 'smem constant byte address 0x4 - core index']
  #allocation1 [shape = 'u32[144,128]{1,0:T(1,128)}', space=vmem, size = 0x12000, scoped, tag = 'internal scratch']
  %s0 = inlined_call_operand.vmem [shape: f32[256,10], index: 0, kind: input, shape index: {}]
  %s1 = inlined_call_operand.vmem [shape: s32[1,256], index: 1, kind: input, shape index: {}]
  %s2 = inlined_call_operand.hbm [shape: f32[2,1,128], index: 2, kind: output, shape index: {}]
  %s3 = sld [smem:[#allocation0]]
  $region41: #{tpu_custom_call.1} parent=0
    _
  %s5 = ssub.s32 1, %s3
  %s6 = scalar_select 0, %s5, %s3
  $region1: #{tpu_custom_call.1} parent=0
    #allocation2 [shape = 'u8[1024]{0}', space=vmem, size = 0x400, scoped, tag = 'output window, operand 0']
    #allocation3 [shape = 's32[2]{0}', space=sflag, size = 0x8, scoped, tag = 'scoped memory for tpu_custom_call.1']
    %7 = vsyncpa [#allocation3], 0
    %s8 = scalar_lea.sflag [#allocation3], 1
    %9 = vsyncpa %s8, 0
    loop: start=0, step=1, limit=4
    $region2: #{tpu_custom_call.1} parent=1 // loop_pre_header
      _
    $region3: #{tpu_custom_call.1} parent=1 // loop_header
      %s11 = sphi 0, %s15
      %p12 = scmp.ge.s32.totalorder %s11, 4
      %s21 = sphi 0, %s23
      %s24 = sphi 0, %s21
      %s25 = sphi 0, %s24
      %s41 = sphi 0, %s25
      %s47 = sphi 0, %s49
      %s50 = sphi 0, %s47
      %s51 = sphi 0, %s50
      %s67 = sphi 0, %s51
      %s73 = sphi 0, %s75
      %s76 = sphi 0, %s73
      %s77 = sphi 0, %s76
      %s93 = sphi 0, %s77
    $region4: #{tpu_custom_call.1} parent=1 // loop_header_branch
      %14 = sbr.rel (%p12) target = $region8
    $region5: #{tpu_custom_call.1} parent=1 // loop_body
      %s16 = ssub.s32 %s11, 1
      %s17 = ssub.s32 %s11, 2
      %s18 = sadd.s32 %s11, 1
      %s19 = ssub.s32 %s11, %s18
      %p20 = scmp.eq.s32.totalorder %s19, 0
      %s22 = sadd.s32 %s21, 1
      %s23 = scalar_select %p20, %s21, %s22
      %p26 = pneg %p20
      %p27 = scmp.eq.s32.totalorder %s11, 1
      %p28 = por %p26, %p27
      %p29 = scmp.ne.s32.totalorder %s21, %s24
      %p30 = scmp.eq.s32.totalorder %s11, 0
      %p31 = por %p29, %p30
      %p32 = scmp.ne.s32.totalorder %s21, %s24
      %p33 = scmp.eq.s32.totalorder %s16, 1
      %p34 = por %p32, %p33
      %p35 = scmp.ne.s32.totalorder %s24, %s25
      %p36 = scmp.eq.s32.totalorder %s16, 0
      %p37 = por %p35, %p36
      %p38 = scmp.ne.s32.totalorder %s24, %s25
      %p39 = scmp.eq.s32.totalorder %s17, 1
      %p40 = por %p38, %p39
      %p42 = scmp.ne.s32.totalorder %s25, %s41
      %p43 = scmp.eq.s32.totalorder %s17, 0
      %p44 = por %p42, %p43
      %s45 = ssub.s32 %s11, %s18
      %p46 = scmp.eq.s32.totalorder %s45, 0
      %s48 = sadd.s32 %s47, 1
      %s49 = scalar_select %p46, %s47, %s48
      %p52 = pneg %p46
      %p53 = scmp.eq.s32.totalorder %s11, 1
      %p54 = por %p52, %p53
      %p55 = scmp.ne.s32.totalorder %s47, %s50
      %p56 = scmp.eq.s32.totalorder %s11, 0
      %p57 = por %p55, %p56
      %p58 = scmp.ne.s32.totalorder %s47, %s50
      %p59 = scmp.eq.s32.totalorder %s16, 1
      %p60 = por %p58, %p59
      %p61 = scmp.ne.s32.totalorder %s50, %s51
      %p62 = scmp.eq.s32.totalorder %s16, 0
      %p63 = por %p61, %p62
      %p64 = scmp.ne.s32.totalorder %s50, %s51
      %p65 = scmp.eq.s32.totalorder %s17, 1
      %p66 = por %p64, %p65
      %p68 = scmp.ne.s32.totalorder %s51, %s67
      %p69 = scmp.eq.s32.totalorder %s17, 0
      %p70 = por %p68, %p69
      %s71 = ssub.s32 %s11, %s18
      %p72 = scmp.eq.s32.totalorder %s71, 0
      %s74 = sadd.s32 %s73, 1
      %s75 = scalar_select %p72, %s73, %s74
      %p78 = pneg %p72
      %p79 = scmp.eq.s32.totalorder %s11, 1
      %p80 = por %p78, %p79
      %p81 = scmp.ne.s32.totalorder %s73, %s76
      %p82 = scmp.eq.s32.totalorder %s11, 0
      %p83 = por %p81, %p82
      %p84 = scmp.ne.s32.totalorder %s73, %s76
      %p85 = scmp.eq.s32.totalorder %s16, 1
      %p86 = por %p84, %p85
      %p87 = scmp.ne.s32.totalorder %s76, %s77
      %p88 = scmp.eq.s32.totalorder %s16, 0
      %p89 = por %p87, %p88
      %p90 = scmp.ne.s32.totalorder %s76, %s77
      %p91 = scmp.eq.s32.totalorder %s17, 1
      %p92 = por %p90, %p91
      %p94 = scmp.ne.s32.totalorder %s77, %s93
      %p95 = scmp.eq.s32.totalorder %s17, 0
      %p96 = por %p94, %p95
      %p97 = scmp.le.s32.totalorder 1, %s11
      %p98 = scmp.lt.s32.totalorder %s11, 3
      %p99 = pnand %p97, %p98
      %p100 = pneg %p99
      // Predicated region
      $region9: #{tpu_custom_call.1} parent=5 // pred_check
        _
      $region10: #{tpu_custom_call.1} parent=5 // pred_check_branch
        %102 = sbr.rel (%p99) target = $region12
      $region11: #{tpu_custom_call.1} parent=5 // pred_region
        %s103 = ssub.s32 %s11, 1
      $region12: #{tpu_custom_call.1} parent=5 // pred_fallthru
        _
      %p104 = scmp.lt.s32.totalorder %s11, 2
      // Predicated region
      $region13: #{tpu_custom_call.1} parent=5 // pred_check
        %p105 = pneg %p104
      $region14: #{tpu_custom_call.1} parent=5 // pred_check_branch
        %107 = sbr.rel (%p105) target = $region16
      $region15: #{tpu_custom_call.1} parent=5 // pred_region
        // Predicated region
        $region17: #{tpu_custom_call.1} parent=15 // pred_check
          %p108 = pneg %p31
        $region18: #{tpu_custom_call.1} parent=15 // pred_check_branch
          %110 = sbr.rel (%p108) target = $region20
        $region19: #{tpu_custom_call.1} parent=15 // pred_region
          %s111 = smul.u32 16, %s11
          %p112 = scmp.lt.s32.totalorder %s111, 31
          %s113 = scalar_select %p112, %s111, 31
          %s114 = smul.addr %s113, 8
          %s115 = scalar_lea.vmem %s0, %s114
          %s116 = smul.u32 16, %s11
        $region20: #{tpu_custom_call.1} parent=15 // pred_fallthru
          _
        // Predicated region
        $region21: #{tpu_custom_call.1} parent=15 // pred_check
          %p117 = pneg %p57
        $region22: #{tpu_custom_call.1} parent=15 // pred_check_branch
          %119 = sbr.rel (%p117) target = $region24
        $region23: #{tpu_custom_call.1} parent=15 // pred_region
          %p120 = scmp.lt.s32.totalorder %s11, 1
          %s121 = scalar_select %p120, %s11, 1
          %s122 = scalar_lea.vmem %s1, %s121
        $region24: #{tpu_custom_call.1} parent=15 // pred_fallthru
          _
      $region16: #{tpu_custom_call.1} parent=5 // pred_fallthru
        _
      %p123 = scmp.le.s32.totalorder 1, %s11
      %p124 = scmp.lt.s32.totalorder %s11, 3
      %p125 = pnand %p123, %p124
      %p126 = pneg %p125
      // Predicated region
      $region25: #{tpu_custom_call.1} parent=5 // pred_check
        _
      $region26: #{tpu_custom_call.1} parent=5 // pred_check_branch
        %128 = sbr.rel (%p125) target = $region28
      $region27: #{tpu_custom_call.1} parent=5 // pred_region
        %s129 = ssub.s32 %s11, 1
        %s130 = smul.u32 16, %s16
        %p131 = scmp.lt.s32.totalorder %s130, 31
        %s132 = scalar_select %p131, %s130, 31
        %s133 = smul.addr %s132, 8
        %s134 = scalar_lea.vmem %s0, %s133
        %p135 = pneg %p37
        %p136 = pneg %p34
        %p137 = scmp.lt.s32.totalorder %s16, 1
        %s138 = scalar_select %p137, %s16, 1
        %s139 = scalar_lea.vmem %s1, %s138
        %p140 = pneg %p63
        %p141 = pneg %p60
        %p142 = pneg %p89
        %p143 = pneg %p86
        %s144 = sand.u32 %s76, 1
        %s145 = scalar_lea.sflag [#allocation3], %s144
        %s146 = sand.u32 %s76, 1
        %s147 = scalar_lea.vmem [#allocation2], %s146
        %s148 = smul.u32 16, %s16
        %p149 = scmp.lt.s32.totalorder %s148, 31
        %s150 = scalar_select %p149, %s148, 31
        %s151 = smul.addr %s150, 8
        %s152 = scalar_lea.vmem %s0, %s151
        %s153 = smul.u32 16, %s16
        %p154 = scmp.lt.s32.totalorder %s16, 1
        %s155 = scalar_select %p154, %s16, 1
        %s156 = scalar_lea.vmem %s1, %s155
        %v157 = vld [vmem:[%s152] sm:$0xff]
        %v158 = vld [vmem:[%s152 + $0x8] sm:$0xff]
        %v159 = vld [vmem:[%s152 + $0x10] sm:$0xff]
        %v160 = vld [vmem:[%s152 + $0x18] sm:$0xff]
        %v161 = vld [vmem:[%s152 + $0x20] sm:$0xff]
        %v162 = vld [vmem:[%s152 + $0x28] sm:$0xff]
        %v163 = vld [vmem:[%s152 + $0x30] sm:$0xff]
        %v164 = vld [vmem:[%s152 + $0x38] sm:$0xff]
        %v165 = vld [vmem:[%s152 + $0x40] sm:$0xff]
        %v166 = vld [vmem:[%s152 + $0x48] sm:$0xff]
        %v167 = vld [vmem:[%s152 + $0x50] sm:$0xff]
        %v168 = vld [vmem:[%s152 + $0x58] sm:$0xff]
        %v169 = vld [vmem:[%s152 + $0x60] sm:$0xff]
        %v170 = vld [vmem:[%s152 + $0x68] sm:$0xff]
        %v171 = vld [vmem:[%s152 + $0x70] sm:$0xff]
        %v172 = vld [vmem:[%s152 + $0x78] sm:$0xff]
        %v173 = vld [vmem:[%s156] sm:$0x1]
        %174 = vxpose.xlu0.b32.start [1/16] %v157, 128
        %175 = vxpose.xlu0.b32.cont [2/16] %v158, 128
        %176 = vxpose.xlu0.b32.cont [3/16] %v159, 128
        %177 = vxpose.xlu0.b32.cont [4/16] %v160, 128
        %178 = vxpose.xlu0.b32.cont [5/16] %v161, 128
        %179 = vxpose.xlu0.b32.cont [6/16] %v162, 128
        %180 = vxpose.xlu0.b32.cont [7/16] %v163, 128
        %181 = vxpose.xlu0.b32.cont [8/16] %v164, 128
        %182 = vxpose.xlu0.b32.cont [9/16] %v165, 128
        %183 = vxpose.xlu0.b32.cont [10/16] %v166, 128
        %184 = vxpose.xlu0.b32.cont [11/16] %v167, 128
        %185 = vxpose.xlu0.b32.cont [12/16] %v168, 128
        %186 = vxpose.xlu0.b32.cont [13/16] %v169, 128
        %187 = vxpose.xlu0.b32.cont [14/16] %v170, 128
        %188 = vxpose.xlu0.b32.cont [15/16] %v171, 128
        %189 = vxpose.xlu0.b32.end [16/16] %v172, 128
        %v190 = vpop.trf.xlu0
        %v191 = vpop.trf.xlu0
        %v192 = vpop.trf.xlu0
        %v193 = vpop.trf.xlu0
        %v194 = vpop.trf.xlu0
        %v195 = vpop.trf.xlu0
        %v196 = vpop.trf.xlu0
        %v197 = vpop.trf.xlu0
        %v198 = vpop.trf.xlu0
        %v199 = vpop.trf.xlu0
        %v200 = vpop.trf.xlu0
        %v201 = vpop.trf.xlu0
        %v202 = vpop.trf.xlu0
        %v203 = vpop.trf.xlu0
        %v204 = vpop.trf.xlu0
        %v205 = vpop.trf.xlu0
        %vm206 = vcmask 1041408
        %v207 = vsel %vm206, %v191, -inf
        %v208 = vmax.f32 %v190, %v207
        %v209 = vrot.slane %v208, 4
        %v210 = vmax.f32 %v208, %v209
        %v211 = vrot.slane %v210, 2
        %v212 = vmax.f32 %v210, %v211
        %v213 = vrot.slane %v212, 1
        %v214 = vmax.f32 %v212, %v213
        %v215 = vsub.f32 %v190, %v214
        %v216 = vsub.f32 %v191, %v214
        %v217 = vmul.f32 %v215, 1.442695
        %v218 = vpow.pop %v217
        %v219 = vmul.f32 %v216, 1.442695
        %v220 = vpow.pop %v219
        %v221 = vsel %vm206, %v220, 0.0
        %v222 = vadd.f32 %v218, %v221
        %v223 = vrot.slane %v222, 4
        %v224 = vadd.f32 %v222, %v223
        %v225 = vrot.slane %v224, 2
        %v226 = vadd.f32 %v224, %v225
        %v227 = vrot.slane %v226, 1
        %v228 = vadd.f32 %v226, %v227
        %v229 = vlog2.pop %v228
        %v230 = vmul.f32 %v229, 0.6931472
        %v231 = vlaneseq
        %v232 = vshrl.u32 %v231, 7
        %v233 = vadd.s32 %v232, 8
        %v234 = vlaneseq
        %v235 = vshrl.u32 %v234, 7
        %v236 = vsub.s32 0, %v235
        %v237 = vrot.slane %v173, %v236
        %vm238 = vcmp.eq.s32.totalorder %v232, %v237
        %vm239 = vcmp.eq.s32.totalorder %v233, %v237
        %v240 = vsel %vm238, %v215, 0.0
        %v241 = vsel %vm239, %v216, 0.0
        %v242 = vsel %vm206, %v241, 0.0
        %v243 = vadd.f32 %v240, %v242
        %v244 = vrot.slane %v243, 4
        %v245 = vadd.f32 %v243, %v244
        %v246 = vrot.slane %v245, 2
        %v247 = vadd.f32 %v245, %v246
        %v248 = vrot.slane %v247, 1
        %v249 = vadd.f32 %v247, %v248
        %v250 = vsub.f32 %v249, %v230
        %v251 = vmul.f32 %v250, 1.442695
        %v252 = vpow.pop %v251
        %v253 = vsub.f32 1.0, %v252
        %v254 = vmax.f32 %v253, 0.0
        %v255 = vmul.f32 %v254, %v254
        %v256 = vmul.f32 %v255, %v250
        %vm257 = vcmask 1040384
        %v258 = vsel %vm257, %v256, 0.0
        %259 = vadd.xlane.f32.xlu0 %v258
        %v260 = vpop.xlane.xlu0 %259
        %v261 = vrot.slane %v260, 4
        %v262 = vadd.f32 %v260, %v261
        %v263 = vrot.slane %v262, 2
        %v264 = vadd.f32 %v262, %v263
        %v265 = vrot.slane %v264, 1
        %v266 = vadd.f32 %v264, %v265
        %s267 = vtos %v266
        %s268 = ssub.f32 0.0, %s267
        %v269 = vstv %s268
        %270 = vst [vmem:[%s147] sm:$0x1] %v269
        %s271 = sand.u32 %s76, 1
        %s272 = scalar_lea.sflag [#allocation3], %s271
        %s273 = sand.u32 %s76, 1
        %s274 = scalar_lea.vmem [#allocation2], %s273
        // Predicated region
        $region29: #{tpu_custom_call.1} parent=27 // pred_check
          %p275 = pneg %p86
        $region30: #{tpu_custom_call.1} parent=27 // pred_check_branch
          %277 = sbr.rel (%p275) target = $region32
        $region31: #{tpu_custom_call.1} parent=27 // pred_region
          %s279 = ssub.s32 16, 16
          %280 = vsyncadd %s272, %s279
          %s281 = smul.addr %s16, 16
          %s282 = scalar_lea.hbm %s2, %s281
          %s284 = sshll.u32 %s274, 4
          %s285 = int_to_ptr.vmem [resolvable:$true] %s284
          %287 = dma.vmem_to_hbm [thread:$0]  %s285, 16, %s282, %s272
        $region32: #{tpu_custom_call.1} parent=27 // pred_fallthru
          _
      $region28: #{tpu_custom_call.1} parent=5 // pred_fallthru
        _
      %p288 = scmp.le.s32.totalorder 2, %s11
      // Predicated region
      $region33: #{tpu_custom_call.1} parent=5 // pred_check
        %p289 = pneg %p288
      $region34: #{tpu_custom_call.1} parent=5 // pred_check_branch
        %291 = sbr.rel (%p289) target = $region36
      $region35: #{tpu_custom_call.1} parent=5 // pred_region
        %s292 = ssub.s32 %s11, 2
        // Predicated region
        $region37: #{tpu_custom_call.1} parent=35 // pred_check
          %p293 = pneg %p92
        $region38: #{tpu_custom_call.1} parent=35 // pred_check_branch
          %295 = sbr.rel (%p293) target = $region40
        $region39: #{tpu_custom_call.1} parent=35 // pred_region
          %s296 = sand.u32 %s77, 1
          %s297 = scalar_lea.sflag [#allocation3], %s296
          %s298 = sand.u32 %s77, 1
          %s299 = scalar_lea.vmem [#allocation2], %s298
          %300 = dma.done %s297, 16
        $region40: #{tpu_custom_call.1} parent=35 // pred_fallthru
          _
      $region36: #{tpu_custom_call.1} parent=5 // pred_fallthru
        _
    $region6: #{tpu_custom_call.1} parent=1 // loop_footer
      %s15 = sadd.s32 1, %s11
    $region7: #{tpu_custom_call.1} parent=1 // loop_footer_branch
      %10 = sbr.rel target = $region3
    $region8: #{tpu_custom_call.1} parent=1 // loop_exit
      _
    %301 = vsyncpa [#allocation3], 1
    %s302 = scalar_lea.sflag [#allocation3], 1
    %303 = vsyncpa %s302, 1

</llo_original>
